<compile_context>
chip_gen: v7x
topology: tpu7x:2x2x1
jax: 0.10.0
libtpu: 0.0.40
codegen_flags: <defaults>
</compile_context>

<pallas_src>
import jax
import jax.numpy as jnp
from jax.experimental import pallas as pl
from jax.experimental.pallas import tpu as pltpu

H = 320         # channels (SetTransformerAggregation(320, heads=2))
HP = 384        # output/lane dim padded to 3*128 (lane-dense stores)
B_PAD = 8       # single-row dense batch padded to 8 sublanes
HEADS = 2       # used only by the plain-JAX reference (softmax over 1 key == 1)
N_LAYERS = 7    # folded stack: enc{vo,lin}, pma{pre,vo,lin}, dec{vo,lin}


# ---------------------------------------------------------------------------
# Pallas kernel: reachable SetTransformer forward for a 1-element set,
# expressed as a uniform 7-layer sweep.  Per layer k:
#     t = h[:, :320] @ W[k] + b[k]            (bf16 MXU, f32 accumulate)
#     t = relu(t)                 for k in {1, 2, 4, 6}
#     h = keep_k * h + t          keep_k = 0 for k in {2, 3}, else 1
# Layer table (weights pre-transposed so y = x @ W):
#   0: enc  Wv·Wo (fold)   1: enc  Wlin
#   2: pma  pre-lin        3: pma  Wv·Wo (fold, bias += seed)   4: pma Wlin
#   5: dec  Wv·Wo (fold)   6: dec  Wlin
# ---------------------------------------------------------------------------
def set_transformer_kernel(x_ref, w_ref, b_ref, o_ref, h_ref):
    k = pl.program_id(0)

    @pl.when(k == 0)
    def _():
        h_ref[...] = x_ref[...]                     # init activation carry

    h = h_ref[...]                                  # [B_PAD, HP] f32
    # Weights keep only the 320 meaningful contraction rows; slice the LHS
    # lanes to H before the MXU push.  bf16 operands, f32 accumulation.
    t = (jnp.dot(h[:, :H].astype(jnp.bfloat16), w_ref[0],
                 preferred_element_type=jnp.float32) + b_ref[0])

    use_relu = (k == 1) | (k == 2) | (k == 4) | (k == 6)
    t = jnp.where(use_relu, jnp.maximum(t, 0.0), t)

    # layers 2 (PMA pre-lin) and 3 (PMA MAB with seed folded into its bias)
    # replace the activation; all other layers are residual adds.
    keep = jnp.where((k == 2) | (k == 3), 0.0, 1.0)
    h = keep * h + t
    h_ref[...] = h

    @pl.when(k == N_LAYERS - 1)
    def _():
        o_ref[...] = h                              # lane-dense [8, 384] store


def set_transformer_step(x_pad, W, B):
    """Run the reachable SetTransformer path on a padded [B_PAD, HP] batch."""
    flops = N_LAYERS * 2 * B_PAD * H * HP
    bytes_accessed = (W.size * 2 + B.size * 4
                      + x_pad.size * 4 + B_PAD * HP * 4)
    # TODO(synk): if this step is ever invoked for many sets (per target node /
    # per graph), batch them along the sublane axis and/or a "parallel" grid
    # axis with the weight index_map kept grid-invariant, so the ~1.7 MB weight
    # stream is amortized and the MXU M-dimension is filled.
    return pl.pallas_call(
        set_transformer_kernel,
        out_shape=jax.ShapeDtypeStruct((B_PAD, HP), jnp.float32),
        grid_spec=pltpu.PrefetchScalarGridSpec(
            num_scalar_prefetch=0,
            grid=(N_LAYERS,),
            in_specs=[
                pl.BlockSpec((B_PAD, HP), lambda k: (0, 0)),    # x: DMA'd once
                pl.BlockSpec((1, H, HP), lambda k: (k, 0, 0)),  # per-layer W
                pl.BlockSpec((1, 1, HP), lambda k: (k, 0, 0)),  # per-layer bias
            ],
            out_specs=pl.BlockSpec((B_PAD, HP), lambda k: (0, 0)),
            scratch_shapes=[pltpu.VMEM((B_PAD, HP), jnp.float32)],
        ),
        compiler_params=pltpu.CompilerParams(
            dimension_semantics=("arbitrary",)),
        cost_estimate=pl.CostEstimate(flops=flops, transcendentals=0,
                                      bytes_accessed=bytes_accessed),
    )(x_pad, W, B)


# ---------------------------------------------------------------------------
# Parameter setup (deterministic).  Master weights are rounded to bf16 values
# so the kernel (bf16) and the reference (f32) share identical weight values.
# ---------------------------------------------------------------------------
def make_params(key):
    bound = 1.0 / jnp.sqrt(jnp.float32(H))
    rb = lambda a: a.astype(jnp.bfloat16).astype(jnp.float32)

    def u(k, shape):
        return jax.random.uniform(k, shape, jnp.float32, -bound, bound)

    def mab_params(k):
        ks = jax.random.split(k, 6)
        return dict(in_w=rb(u(ks[0], (3 * H, H))), in_b=u(ks[1], (3 * H,)),
                    out_w=rb(u(ks[2], (H, H))), out_b=u(ks[3], (H,)),
                    lin_w=rb(u(ks[4], (H, H))), lin_b=u(ks[5], (H,)))

    k_enc, k_pma, k_dec, k_pre, k_seed = jax.random.split(key, 5)
    kp1, kp2 = jax.random.split(k_pre)
    return dict(
        enc=mab_params(k_enc),
        pma=mab_params(k_pma),
        dec=mab_params(k_dec),
        pma_pre_w=rb(u(kp1, (H, H))), pma_pre_b=u(kp2, (H,)),
        seed=jax.random.normal(k_seed, (1, H), jnp.float32) * 0.1,
    )


def pack_kernel_params(params):
    """Build the folded, bf16, [7, 320, 384] weight stack and [7, 1, 384] f32
    bias stack (out_proj∘V composed in f32, rounded to bf16 once; PMA seed
    folded into the PMA bias; 64 zero contraction rows dropped)."""
    hi = jax.lax.Precision.HIGHEST

    def w_pad(m):     # [H, H] in y = x @ m orientation -> [H, HP] bf16
        return (jnp.zeros((H, HP), jnp.float32).at[:, :H].set(m)
                .astype(jnp.bfloat16))

    def b_pad(b):     # [H] -> [1, HP] f32 (lanes 320..383 stay zero)
        return jnp.zeros((1, HP), jnp.float32).at[0, :H].set(b)

    def fold_vo(p, extra_bias=None):
        wv, bv = p['in_w'][2 * H:], p['in_b'][2 * H:]    # V block of q/k/v stack
        m = jnp.dot(wv.T, p['out_w'].T, precision=hi)    # compose in f32
        b = jnp.dot(bv, p['out_w'].T, precision=hi) + p['out_b']
        if extra_bias is not None:
            b = b + extra_bias
        return w_pad(m), b_pad(b)

    def lin(p):
        return w_pad(p['lin_w'].T), b_pad(p['lin_b'])

    enc_vo_w, enc_vo_b = fold_vo(params['enc'])
    pma_vo_w, pma_vo_b = fold_vo(params['pma'], extra_bias=params['seed'][0])
    dec_vo_w, dec_vo_b = fold_vo(params['dec'])
    enc_lin_w, enc_lin_b = lin(params['enc'])
    pma_lin_w, pma_lin_b = lin(params['pma'])
    dec_lin_w, dec_lin_b = lin(params['dec'])
    pre_w, pre_b = w_pad(params['pma_pre_w'].T), b_pad(params['pma_pre_b'])

    W = jnp.stack([enc_vo_w, enc_lin_w, pre_w, pma_vo_w, pma_lin_w,
                   dec_vo_w, dec_lin_w])                  # [7, 320, 384] bf16
    B = jnp.stack([enc_vo_b, enc_lin_b, pre_b, pma_vo_b, pma_lin_b,
                   dec_vo_b, dec_lin_b])                  # [7, 1, 384] f32
    return W, B


# ---------------------------------------------------------------------------
# Forward pass of SetAggregator
# ---------------------------------------------------------------------------
def set_aggregator_forward(msg, index, t, dim_size, kernel_params):
    """msg: [N, 320] f32, index: [N] i32, t: [N] f32, dim_size: python int."""
    W, B = kernel_params
    N = msg.shape[0]

    # --- scatter_max(t, index, dim=0, dim_size) -> argmax (glue, plain JAX) ---
    match = index[None, :] == jnp.arange(dim_size, dtype=index.dtype)[:, None]  # [D,N]
    masked_t = jnp.where(match, t[None, :], -jnp.inf)
    has_any = jnp.any(match, axis=1)
    argmax = jnp.where(has_any, jnp.argmax(masked_t, axis=1), N)
    mask = argmax < N                                                            # [D]

    out = jnp.zeros((dim_size, H), dtype=msg.dtype)

    # val, indices = index.sort();  `indices.size(0) == 1` is a static shape check.
    if N == 1:
        indices = jnp.argsort(index)
        x = msg[indices][0]                                   # [320]
        x_pad = (jnp.zeros((B_PAD, HP), jnp.float32)
                 .at[0, :H].set(x.astype(jnp.float32)))        # lane/sublane padded
        ret = set_transformer_step(x_pad, W, B)                # [B_PAD, HP]
        ret0 = jnp.nan_to_num(ret[0, :H]).astype(msg.dtype)    # nan_to_num + flatten
        # out[mask] = ret  -- shape-consistent only when index[0] == 0, in which
        # case the single masked row is row 0.
        out = out.at[0].set(jnp.where(mask[0], ret0, out[0]))
    # TODO(synk): for N > 1 the PyTorch module returns all-zeros; no aggregation runs.
    return out


# ---------------------------------------------------------------------------
# Plain-JAX reference (full MHA incl. Q/K + softmax, f32) for the sanity check
# ---------------------------------------------------------------------------
_HI = jax.lax.Precision.HIGHEST


def _mm(a, b):
    return jnp.dot(a, b, precision=_HI)


def _mha_ref(q, kv, in_w, in_b, out_w, out_b, heads=HEADS):
    C = q.shape[-1]
    wq, wk, wv = in_w[:C], in_w[C:2 * C], in_w[2 * C:]
    bq, bk, bv = in_b[:C], in_b[C:2 * C], in_b[2 * C:]
    Q = _mm(q, wq.T) + bq
    K = _mm(kv, wk.T) + bk
    V = _mm(kv, wv.T) + bv
    d = C // heads
    Qh = Q.reshape(-1, heads, d).transpose(1, 0, 2)
    Kh = K.reshape(-1, heads, d).transpose(1, 0, 2)
    Vh = V.reshape(-1, heads, d).transpose(1, 0, 2)
    att = jax.nn.softmax(
        jnp.einsum('hqd,hkd->hqk', Qh, Kh, precision=_HI) / jnp.sqrt(jnp.float32(d)),
        axis=-1)
    O = jnp.einsum('hqk,hkd->hqd', att, Vh, precision=_HI)
    O = O.transpose(1, 0, 2).reshape(-1, C)
    return _mm(O, out_w.T) + out_b


def _mab_ref(x, y, p):
    a = _mha_ref(x, y, p['in_w'], p['in_b'], p['out_w'], p['out_b'])
    h = a + x
    return h + jax.nn.relu(_mm(h, p['lin_w'].T) + p['lin_b'])


def set_aggr_ref(x, params):
    """x: [1, 320] single-element dense set; returns [1, 320]."""
    h = _mab_ref(x, x, params['enc'])                                       # encoder SAB
    p = jax.nn.relu(_mm(h, params['pma_pre_w'].T) + params['pma_pre_b'])     # PMA pre-lin
    h = _mab_ref(params['seed'], p, params['pma'])                           # PMA MAB
    h = _mab_ref(h, h, params['dec'])                                        # decoder SAB
    return jnp.nan_to_num(h)


if __name__ == "__main__":
    key = jax.random.PRNGKey(0)
    k_param, k_msg, k_t = jax.random.split(key, 3)

    params = make_params(k_param)
    kernel_params = pack_kernel_params(params)

    # Small, forward-consistent shapes: a single message of width 320.
    N, dim_size = 1, 5
    msg = jax.random.normal(k_msg, (N, H), jnp.float32)
    index = jnp.zeros((N,), jnp.int32)                 # message belongs to node 0
    t = jax.random.uniform(k_t, (N,), jnp.float32)

    out = set_aggregator_forward(msg, index, t, dim_size, kernel_params)
    out = jax.block_until_ready(out)

    # sanity: row 0 matches the full f32 reference (bf16 weight values shared),
    # other rows are zero.  Tolerance accounts for bf16 rounding of the folded
    # out_proj∘V matrices and of the activations at each MXU push.
    ref_row0 = set_aggr_ref(msg[0:1], params)[0]
    assert out.shape == (dim_size, H)
    assert jnp.allclose(out[0], ref_row0, atol=5e-2, rtol=5e-2), \
        float(jnp.max(jnp.abs(out[0] - ref_row0)))
    assert jnp.allclose(out[1:], 0.0)

    print("KERNEL_OK")
</pallas_src>

<mosaic_0001>
module attributes {stable_mosaic.version = 11 : i64} {
  func.func @set_transformer_kernel(%arg0: i32, %arg1: memref<8x384xf32, #tpu.memory_space<vmem>>, %arg2: memref<1x320x384xbf16, #tpu.memory_space<vmem>>, %arg3: memref<1x1x384xf32, #tpu.memory_space<vmem>>, %arg4: memref<8x384xf32, #tpu.memory_space<vmem>>, %arg5: memref<8x384xf32, #tpu.memory_space<vmem>>) attributes {dimension_semantics = [#tpu.dimension_semantics<arbitrary>], iteration_bounds = array<i64: 7>, scalar_prefetch = 0 : i64, scratch_operands = 1 : i64, tpu.core_type = #tpu.core_type<tc>, window_params = [{pipeline_mode = #tpu.pipeline_mode<synchronous>, transform_indices = @transform_0, window_bounds = array<i64: 8, 384>}, {transform_indices = @transform_1, window_bounds = array<i64: 1, 320, 384>}, {transform_indices = @transform_2, window_bounds = array<i64: 1, 1, 384>}, {pipeline_mode = #tpu.pipeline_mode<synchronous>, transform_indices = @transform_3, window_bounds = array<i64: 8, 384>}]} {
    %c0_i32 = arith.constant 0 : i32
    %0 = arith.cmpi eq, %arg0, %c0_i32 : i32
    %1 = arith.extui %0 : i1 to i32
    %c0_i32_0 = arith.constant 0 : i32
    %2 = arith.cmpi ne, %1, %c0_i32_0 : i32
    scf.if %2 {
      %c0_16 = arith.constant 0 : index
      %c0_17 = arith.constant 0 : index
      %34 = vector.load %arg1[%c0_16, %c0_17] : memref<8x384xf32, #tpu.memory_space<vmem>>, vector<8x384xf32>
      %c0_18 = arith.constant 0 : index
      %c0_19 = arith.constant 0 : index
      %35 = vector.load %arg5[%c0_18, %c0_19] : memref<8x384xf32, #tpu.memory_space<vmem>>, vector<8x384xf32>
      tpu.vector_store %arg5[%c0_18, %c0_19], %34 {strides = array<i32>} : memref<8x384xf32, #tpu.memory_space<vmem>>, vector<8x384xf32>,
    } else {
    }
    %c0 = arith.constant 0 : index
    %c0_1 = arith.constant 0 : index
    %3 = vector.load %arg5[%c0, %c0_1] : memref<8x384xf32, #tpu.memory_space<vmem>>, vector<8x384xf32>
    %4 = vector.extract_strided_slice %3 {offsets = [0, 0], sizes = [8, 320], strides = [1, 1]} : vector<8x384xf32> to vector<8x320xf32>
    %5 = arith.truncf %4 : vector<8x320xf32> to vector<8x320xbf16>
    %c0_2 = arith.constant 0 : index
    %c0_3 = arith.constant 0 : index
    %c0_4 = arith.constant 0 : index
    %6 = vector.load %arg2[%c0_2, %c0_3, %c0_4] : memref<1x320x384xbf16, #tpu.memory_space<vmem>>, vector<1x320x384xbf16>
    %7 = vector.shape_cast %6 : vector<1x320x384xbf16> to vector<320x384xbf16>
    %cst = arith.constant dense<0.000000e+00> : vector<8x384xf32>
    %8 = tpu.matmul %5, %7, %cst {dimension_numbers = #tpu.dot_dimension_numbers<[1], [0], [0], [1], [0, 0, 1, 1], [], []>} : vector<8x320xbf16>, vector<320x384xbf16>, vector<8x384xf32> -> vector<8x384xf32>
    %c0_5 = arith.constant 0 : index
    %c0_6 = arith.constant 0 : index
    %c0_7 = arith.constant 0 : index
    %9 = vector.load %arg3[%c0_5, %c0_6, %c0_7] : memref<1x1x384xf32, #tpu.memory_space<vmem>>, vector<1x1x384xf32>
    %10 = vector.shape_cast %9 : vector<1x1x384xf32> to vector<1x384xf32>
    %11 = vector.broadcast %10 : vector<1x384xf32> to vector<8x384xf32>
    %12 = arith.addf %8, %11 : vector<8x384xf32>
    %c1_i32 = arith.constant 1 : i32
    %13 = arith.cmpi eq, %arg0, %c1_i32 : i32
    %c2_i32 = arith.constant 2 : i32
    %14 = arith.cmpi eq, %arg0, %c2_i32 : i32
    %15 = arith.ori %13, %14 : i1
    %c4_i32 = arith.constant 4 : i32
    %16 = arith.cmpi eq, %arg0, %c4_i32 : i32
    %17 = arith.ori %15, %16 : i1
    %c6_i32 = arith.constant 6 : i32
    %18 = arith.cmpi eq, %arg0, %c6_i32 : i32
    %19 = arith.ori %17, %18 : i1
    %cst_8 = arith.constant 0.000000e+00 : f32
    %20 = vector.broadcast %cst_8 : f32 to vector<8x384xf32>
    %21 = arith.maximumf %12, %20 : vector<8x384xf32>
    %22 = arith.select %19, %21, %12 : vector<8x384xf32>
    %c2_i32_9 = arith.constant 2 : i32
    %23 = arith.cmpi eq, %arg0, %c2_i32_9 : i32
    %c3_i32 = arith.constant 3 : i32
    %24 = arith.cmpi eq, %arg0, %c3_i32 : i32
    %25 = arith.ori %23, %24 : i1
    %cst_10 = arith.constant 0.000000e+00 : f32
    %cst_11 = arith.constant 1.000000e+00 : f32
    %26 = arith.select %25, %cst_10, %cst_11 : f32
    %27 = vector.broadcast %26 : f32 to vector<8x384xf32>
    %28 = arith.mulf %27, %3 : vector<8x384xf32>
    %29 = arith.addf %28, %22 : vector<8x384xf32>
    %c0_12 = arith.constant 0 : index
    %c0_13 = arith.constant 0 : index
    %30 = vector.load %arg5[%c0_12, %c0_13] : memref<8x384xf32, #tpu.memory_space<vmem>>, vector<8x384xf32>
    tpu.vector_store %arg5[%c0_12, %c0_13], %29 {strides = array<i32>} : memref<8x384xf32, #tpu.memory_space<vmem>>, vector<8x384xf32>,
    %c6_i32_14 = arith.constant 6 : i32
    %31 = arith.cmpi eq, %arg0, %c6_i32_14 : i32
    %32 = arith.extui %31 : i1 to i32
    %c0_i32_15 = arith.constant 0 : i32
    %33 = arith.cmpi ne, %32, %c0_i32_15 : i32
    scf.if %33 {
      %c0_16 = arith.constant 0 : index
      %c0_17 = arith.constant 0 : index
      %34 = vector.load %arg4[%c0_16, %c0_17] : memref<8x384xf32, #tpu.memory_space<vmem>>, vector<8x384xf32>
      tpu.vector_store %arg4[%c0_16, %c0_17], %29 {strides = array<i32>} : memref<8x384xf32, #tpu.memory_space<vmem>>, vector<8x384xf32>,
    } else {
    }
    return
  }
  func.func @transform_0(%arg0: i32) -> (i32, i32) {
    %c0_i32 = arith.constant 0 : i32
    %c0_i32_0 = arith.constant 0 : i32
    %c0_i32_1 = arith.constant 0 : i32
    return %c0_i32, %c0_i32_0 : i32, i32
  }
  func.func @transform_1(%arg0: i32) -> (i32, i32, i32) {
    %c0_i32 = arith.constant 0 : i32
    %c0_i32_0 = arith.constant 0 : i32
    %c0_i32_1 = arith.constant 0 : i32
    return %arg0, %c0_i32, %c0_i32_0 : i32, i32, i32
  }
  func.func @transform_2(%arg0: i32) -> (i32, i32, i32) {
    %c0_i32 = arith.constant 0 : i32
    %c0_i32_0 = arith.constant 0 : i32
    %c0_i32_1 = arith.constant 0 : i32
    return %arg0, %c0_i32, %c0_i32_0 : i32, i32, i32
  }
  func.func @transform_3(%arg0: i32) -> (i32, i32) {
    %c0_i32 = arith.constant 0 : i32
    %c0_i32_0 = arith.constant 0 : i32
    %c0_i32_1 = arith.constant 0 : i32
    return %c0_i32, %c0_i32_0 : i32, i32
  }
}

</mosaic_0001>

<llo_original>
// kernel: tpu_custom_call.1
$region0: #{tpu_custom_call.1}
  #allocation0 [shape = 'u32[]', space=smem, size = 0x4, offset = 0x4, fixed_abs, tag = 'smem constant byte address 0x4 - core index']
  #allocation1 [shape = 'u32[144,128]{1,0:T(1,128)}', space=vmem, size = 0x12000, scoped, tag = 'internal scratch']
  #allocation2 [shape = 'f32[8,384]{1,0:T(8,128)}', space=vmem, size = 0x3000, scoped, tag = 'scratch operand']
  %s0 = inlined_call_operand.hbm [shape: f32[8,384], index: 0, kind: input, shape index: {}]
  %s1 = inlined_call_operand.hbm [shape: bf16[7,320,384], index: 1, kind: input, shape index: {}]
  %s2 = inlined_call_operand.hbm [shape: f32[7,1,384], index: 2, kind: input, shape index: {}]
  %s3 = inlined_call_operand.hbm [shape: f32[8,384], index: 3, kind: output, shape index: {}]
  %s4 = sld [smem:[#allocation0]]
  $region65: #{tpu_custom_call.1} parent=0
    _
  %s6 = ssub.s32 1, %s4
  %s7 = scalar_select 0, %s6, %s4
  $region1: #{tpu_custom_call.1} parent=0
    #allocation3 [shape = 'u8[12288]{0}', space=vmem, size = 0x3000, scoped, tag = 'input window, operand 0, single buffered']
    #allocation4 [shape = 's32[2]{0}', space=sflag, size = 0x8, scoped, tag = 'scoped memory for tpu_custom_call.1']
    #allocation5 [shape = 's32[2]{0}', space=sflag, size = 0x8, scoped, tag = 'scoped memory for tpu_custom_call.1']
    #allocation6 [shape = 'u8[491520]{0}', space=vmem, size = 0x78000, scoped, tag = 'input window, operand 1']
    #allocation7 [shape = 's32[2]{0}', space=sflag, size = 0x8, scoped, tag = 'scoped memory for tpu_custom_call.1']
    #allocation8 [shape = 'u8[3072]{0}', space=vmem, size = 0xc00, scoped, tag = 'input window, operand 2']
    #allocation9 [shape = 'u8[12288]{0}', space=vmem, size = 0x3000, scoped, tag = 'output window, operand 0, single buffered']
    %8 = vsyncpa [#allocation4], 0
    %9 = vsyncpa [#allocation7], 0
    %s10 = scalar_lea.sflag [#allocation7], 1
    %11 = vsyncpa %s10, 0
    %12 = vsyncpa [#allocation5], 0
    loop: start=0, step=1, limit=9
    $region2: #{tpu_custom_call.1} parent=1 // loop_pre_header
      _
    $region3: #{tpu_custom_call.1} parent=1 // loop_header
      %s14 = sphi 0, %s18
      %p15 = scmp.ge.s32.totalorder %s14, 9
      %s22 = sphi 0, %s22
      %s24 = sphi 0, %s22
      %s25 = sphi 0, %s24
      %s39 = sphi 0, %s25
      %s45 = sphi 0, %s47
      %s48 = sphi 0, %s45
      %s49 = sphi 0, %s48
      %s65 = sphi 0, %s49
      %s71 = sphi 0, %s73
      %s74 = sphi 0, %s71
      %s75 = sphi 0, %s74
      %s91 = sphi 0, %s75
      %s95 = sphi 0, %s95
      %s97 = sphi 0, %s95
      %s98 = sphi 0, %s97
      %s112 = sphi 0, %s98
    $region4: #{tpu_custom_call.1} parent=1 // loop_header_branch
      %17 = sbr.rel (%p15) target = $region8
    $region5: #{tpu_custom_call.1} parent=1 // loop_body
      %s19 = ssub.s32 %s14, 1
      %s20 = ssub.s32 %s14, 2
      %s21 = sadd.s32 %s14, 1
      %s23 = sadd.s32 %s22, 1
      %p26 = scmp.eq.s32.totalorder %s14, 6
      %p27 = scmp.ne.s32.totalorder %s22, %s24
      %p28 = scmp.eq.s32.totalorder %s14, 0
      %p29 = por %p27, %p28
      %p30 = scmp.ne.s32.totalorder %s22, %s24
      %p31 = scmp.eq.s32.totalorder %s19, 6
      %p32 = por %p30, %p31
      %p33 = scmp.ne.s32.totalorder %s24, %s25
      %p34 = scmp.eq.s32.totalorder %s19, 0
      %p35 = por %p33, %p34
      %p36 = scmp.ne.s32.totalorder %s24, %s25
      %p37 = scmp.eq.s32.totalorder %s20, 6
      %p38 = por %p36, %p37
      %p40 = scmp.ne.s32.totalorder %s25, %s39
      %p41 = scmp.eq.s32.totalorder %s20, 0
      %p42 = por %p40, %p41
      %s43 = ssub.s32 %s14, %s21
      %p44 = scmp.eq.s32.totalorder %s43, 0
      %s46 = sadd.s32 %s45, 1
      %s47 = scalar_select %p44, %s45, %s46
      %p50 = pneg %p44
      %p51 = scmp.eq.s32.totalorder %s14, 6
      %p52 = por %p50, %p51
      %p53 = scmp.ne.s32.totalorder %s45, %s48
      %p54 = scmp.eq.s32.totalorder %s14, 0
      %p55 = por %p53, %p54
      %p56 = scmp.ne.s32.totalorder %s45, %s48
      %p57 = scmp.eq.s32.totalorder %s19, 6
      %p58 = por %p56, %p57
      %p59 = scmp.ne.s32.totalorder %s48, %s49
      %p60 = scmp.eq.s32.totalorder %s19, 0
      %p61 = por %p59, %p60
      %p62 = scmp.ne.s32.totalorder %s48, %s49
      %p63 = scmp.eq.s32.totalorder %s20, 6
      %p64 = por %p62, %p63
      %p66 = scmp.ne.s32.totalorder %s49, %s65
      %p67 = scmp.eq.s32.totalorder %s20, 0
      %p68 = por %p66, %p67
      %s69 = ssub.s32 %s14, %s21
      %p70 = scmp.eq.s32.totalorder %s69, 0
      %s72 = sadd.s32 %s71, 1
      %s73 = scalar_select %p70, %s71, %s72
      %p76 = pneg %p70
      %p77 = scmp.eq.s32.totalorder %s14, 6
      %p78 = por %p76, %p77
      %p79 = scmp.ne.s32.totalorder %s71, %s74
      %p80 = scmp.eq.s32.totalorder %s14, 0
      %p81 = por %p79, %p80
      %p82 = scmp.ne.s32.totalorder %s71, %s74
      %p83 = scmp.eq.s32.totalorder %s19, 6
      %p84 = por %p82, %p83
      %p85 = scmp.ne.s32.totalorder %s74, %s75
      %p86 = scmp.eq.s32.totalorder %s19, 0
      %p87 = por %p85, %p86
      %p88 = scmp.ne.s32.totalorder %s74, %s75
      %p89 = scmp.eq.s32.totalorder %s20, 6
      %p90 = por %p88, %p89
      %p92 = scmp.ne.s32.totalorder %s75, %s91
      %p93 = scmp.eq.s32.totalorder %s20, 0
      %p94 = por %p92, %p93
      %s96 = sadd.s32 %s95, 1
      %p99 = scmp.eq.s32.totalorder %s14, 6
      %p100 = scmp.ne.s32.totalorder %s95, %s97
      %p101 = scmp.eq.s32.totalorder %s14, 0
      %p102 = por %p100, %p101
      %p103 = scmp.ne.s32.totalorder %s95, %s97
      %p104 = scmp.eq.s32.totalorder %s19, 6
      %p105 = por %p103, %p104
      %p106 = scmp.ne.s32.totalorder %s97, %s98
      %p107 = scmp.eq.s32.totalorder %s19, 0
      %p108 = por %p106, %p107
      %p109 = scmp.ne.s32.totalorder %s97, %s98
      %p110 = scmp.eq.s32.totalorder %s20, 6
      %p111 = por %p109, %p110
      %p113 = scmp.ne.s32.totalorder %s98, %s112
      %p114 = scmp.eq.s32.totalorder %s20, 0
      %p115 = por %p113, %p114
      %p116 = scmp.le.s32.totalorder 1, %s14
      %p117 = scmp.lt.s32.totalorder %s14, 8
      %p118 = pnand %p116, %p117
      %p119 = pneg %p118
      // Predicated region
      $region9: #{tpu_custom_call.1} parent=5 // pred_check
        _
      $region10: #{tpu_custom_call.1} parent=5 // pred_check_branch
        %121 = sbr.rel (%p118) target = $region12
      $region11: #{tpu_custom_call.1} parent=5 // pred_region
        %s122 = ssub.s32 %s14, 1
        // Predicated region
        $region13: #{tpu_custom_call.1} parent=11 // pred_check
          %p123 = pneg %p35
        $region14: #{tpu_custom_call.1} parent=11 // pred_check_branch
          %125 = sbr.rel (%p123) target = $region16
        $region15: #{tpu_custom_call.1} parent=11 // pred_region
          %s127 = ssub.s32 384, 384
          %128 = vsyncadd [#allocation4], %s127
          %s130 = sshll.u32 [#allocation3], 4
          %s131 = int_to_ptr.vmem [resolvable:$true] %s130
          %133 = dma.hbm_to_vmem [thread:$0]  %s0, 384, %s131, [#allocation4]
        $region16: #{tpu_custom_call.1} parent=11 // pred_fallthru
          _
      $region12: #{tpu_custom_call.1} parent=5 // pred_fallthru
        _
      %p134 = scmp.lt.s32.totalorder %s14, 7
      // Predicated region
      $region17: #{tpu_custom_call.1} parent=5 // pred_check
        %p135 = pneg %p134
      $region18: #{tpu_custom_call.1} parent=5 // pred_check_branch
        %137 = sbr.rel (%p135) target = $region20
      $region19: #{tpu_custom_call.1} parent=5 // pred_region
        // Predicated region
        $region21: #{tpu_custom_call.1} parent=19 // pred_check
          %p138 = pneg %p55
        $region22: #{tpu_custom_call.1} parent=19 // pred_check_branch
          %140 = sbr.rel (%p138) target = $region24
        $region23: #{tpu_custom_call.1} parent=19 // pred_region
          %s141 = sand.u32 %s14, 1
          %s142 = scalar_lea.sflag [#allocation7], %s141
          %s143 = sand.u32 %s45, 1
          %s144 = smul.addr %s143, 480
          %s145 = scalar_lea.vmem [#allocation6], %s144
          %s147 = ssub.s32 7680, 7680
          %148 = vsyncadd %s142, %s147
          %s149 = smul.addr %s14, 120
          %s150 = smul.addr %s149, 64
          %s151 = scalar_lea.hbm %s1, %s150
          %s152 = sshll.u32 %s145, 4
          %s153 = int_to_ptr.vmem [resolvable:$true] %s152
          %158 = dma.hbm_to_vmem [thread:$0]  %s151, 7680, %s153, %s142, 192, 192, 12
        $region24: #{tpu_custom_call.1} parent=19 // pred_fallthru
          _
        // Predicated region
        $region25: #{tpu_custom_call.1} parent=19 // pred_check
          %p159 = pneg %p81
        $region26: #{tpu_custom_call.1} parent=19 // pred_check_branch
          %161 = sbr.rel (%p159) target = $region28
        $region27: #{tpu_custom_call.1} parent=19 // pred_region
          %s162 = sand.u32 %s14, 1
          %s163 = scalar_lea.sflag [#allocation7], %s162
          %s164 = sand.u32 %s71, 1
          %s165 = smul.addr %s164, 3
          %s166 = scalar_lea.vmem [#allocation8], %s165
          %s168 = ssub.s32 48, 48
          %169 = vsyncadd %s163, %s168
          %s170 = smul.addr %s14, 3
          %s171 = smul.addr %s170, 16
          %s172 = scalar_lea.hbm %s2, %s171
          %s174 = sshll.u32 %s166, 4
          %s175 = int_to_ptr.vmem [resolvable:$true] %s174
          %177 = dma.hbm_to_vmem [thread:$0]  %s172, 48, %s175, %s163
        $region28: #{tpu_custom_call.1} parent=19 // pred_fallthru
          _
      $region20: #{tpu_custom_call.1} parent=5 // pred_fallthru
        _
      %p178 = scmp.le.s32.totalorder 1, %s14
      %p179 = scmp.lt.s32.totalorder %s14, 8
      %p180 = pnand %p178, %p179
      %p181 = pneg %p180
      // Predicated region
      $region29: #{tpu_custom_call.1} parent=5 // pred_check
        _
      $region30: #{tpu_custom_call.1} parent=5 // pred_check_branch
        %183 = sbr.rel (%p180) target = $region32
      $region31: #{tpu_custom_call.1} parent=5 // pred_region
        %s184 = ssub.s32 %s14, 1
        // Predicated region
        $region33: #{tpu_custom_call.1} parent=31 // pred_check
          %p185 = pneg %p35
        $region34: #{tpu_custom_call.1} parent=31 // pred_check_branch
          %187 = sbr.rel (%p185) target = $region36
        $region35: #{tpu_custom_call.1} parent=31 // pred_region
          %188 = dma.done [#allocation4], 384
        $region36: #{tpu_custom_call.1} parent=31 // pred_fallthru
          _
        %s189 = sand.u32 %s19, 1
        %s190 = scalar_lea.sflag [#allocation7], %s189
        %s191 = sand.u32 %s48, 1
        %s192 = smul.addr %s191, 480
        %s193 = scalar_lea.vmem [#allocation6], %s192
        // Predicated region
        $region37: #{tpu_custom_call.1} parent=31 // pred_check
          %p194 = pneg %p61
        $region38: #{tpu_custom_call.1} parent=31 // pred_check_branch
          %196 = sbr.rel (%p194) target = $region40
        $region39: #{tpu_custom_call.1} parent=31 // pred_region
          %197 = dma.done %s190, 7680
        $region40: #{tpu_custom_call.1} parent=31 // pred_fallthru
          _
        %s198 = sand.u32 %s19, 1
        %s199 = scalar_lea.sflag [#allocation7], %s198
        %s200 = sand.u32 %s74, 1
        %s201 = smul.addr %s200, 3
        %s202 = scalar_lea.vmem [#allocation8], %s201
        // Predicated region
        $region41: #{tpu_custom_call.1} parent=31 // pred_check
          %p203 = pneg %p87
        $region42: #{tpu_custom_call.1} parent=31 // pred_check_branch
          %205 = sbr.rel (%p203) target = $region44
        $region43: #{tpu_custom_call.1} parent=31 // pred_region
          %206 = dma.done %s199, 48
        $region44: #{tpu_custom_call.1} parent=31 // pred_fallthru
          _
        %p207 = pneg %p35
        %p208 = pneg %p32
        %s209 = sand.u32 %s19, 1
        %s210 = scalar_lea.sflag [#allocation7], %s209
        %s211 = sand.u32 %s48, 1
        %s212 = smul.addr %s211, 480
        %s213 = scalar_lea.vmem [#allocation6], %s212
        %p214 = pneg %p61
        %p215 = pneg %p58
        %s216 = sand.u32 %s19, 1
        %s217 = scalar_lea.sflag [#allocation7], %s216
        %s218 = sand.u32 %s74, 1
        %s219 = smul.addr %s218, 3
        %s220 = scalar_lea.vmem [#allocation8], %s219
        %p221 = pneg %p87
        %p222 = pneg %p84
        %p223 = pneg %p108
        %p224 = pneg %p105
        %p226 = scmp.eq.s32.totalorder %s19, 0
        // Predicated region
        $region45: #{tpu_custom_call.1} parent=31 // pred_check
          %p227 = pneg %p226
        $region46: #{tpu_custom_call.1} parent=31 // pred_check_branch
          %229 = sbr.rel (%p227) target = $region48
        $region47: #{tpu_custom_call.1} parent=31 // pred_region
          %v230 = vld [vmem:[#allocation3] sm:$0xff]
          %v231 = vld [vmem:[#allocation3 + $0x8] sm:$0xff]
          %v232 = vld [vmem:[#allocation3 + $0x10] sm:$0xff]
          %233 = vst [vmem:[#allocation2] sm:$0xff] %v230
          %234 = vst [vmem:[#allocation2 + $0x8] sm:$0xff] %v231
          %235 = vst [vmem:[#allocation2 + $0x10] sm:$0xff] %v232
        $region48: #{tpu_custom_call.1} parent=31 // pred_fallthru
          _
        %v236 = vld [vmem:[#allocation2] sm:$0xff]
        %v237 = vld [vmem:[#allocation2 + $0x8] sm:$0xff]
        %v238 = vld [vmem:[#allocation2 + $0x10] sm:$0xff]
        %v239 = vpack.c.bf16 %v236, %v236
        %v240 = vpack.c.bf16 %v237, %v237
        %v241 = vpack.c.bf16 %v238, %v238
        %v242 = vld [vmem:[%s193] sm:$0xff]
        %v243 = vld [vmem:[%s193 + $0x8] sm:$0xf]
        %v244 = vld [vmem:[%s193 + $0xc] sm:$0xff]
        %v245 = vld [vmem:[%s193 + $0x14] sm:$0xf]
        %v246 = vld [vmem:[%s193 + $0x18] sm:$0xff]
        %v247 = vld [vmem:[%s193 + $0x20] sm:$0xf]
        %v248 = vld [vmem:[%s193 + $0x24] sm:$0xff]
        %v249 = vld [vmem:[%s193 + $0x2c] sm:$0xf]
        %v250 = vld [vmem:[%s193 + $0x30] sm:$0xff]
        %v251 = vld [vmem:[%s193 + $0x38] sm:$0xf]
        %v252 = vld [vmem:[%s193 + $0x3c] sm:$0xff]
        %v253 = vld [vmem:[%s193 + $0x44] sm:$0xf]
        %v254 = vld [vmem:[%s193 + $0x48] sm:$0xff]
        %v255 = vld [vmem:[%s193 + $0x50] sm:$0xf]
        %v256 = vld [vmem:[%s193 + $0x54] sm:$0xff]
        %v257 = vld [vmem:[%s193 + $0x5c] sm:$0xf]
        %v258 = vld [vmem:[%s193 + $0x60] sm:$0xff]
        %v259 = vld [vmem:[%s193 + $0x68] sm:$0xf]
        %v260 = vld [vmem:[%s193 + $0x6c] sm:$0xff]
        %v261 = vld [vmem:[%s193 + $0x74] sm:$0xf]
        %v262 = vld [vmem:[%s193 + $0x78] sm:$0xff]
        %v263 = vld [vmem:[%s193 + $0x80] sm:$0xf]
        %v264 = vld [vmem:[%s193 + $0x84] sm:$0xff]
        %v265 = vld [vmem:[%s193 + $0x8c] sm:$0xf]
        %v266 = vld [vmem:[%s193 + $0x90] sm:$0xff]
        %v267 = vld [vmem:[%s193 + $0x98] sm:$0xf]
        %v268 = vld [vmem:[%s193 + $0x9c] sm:$0xff]
        %v269 = vld [vmem:[%s193 + $0xa4] sm:$0xf]
        %v270 = vld [vmem:[%s193 + $0xa8] sm:$0xff]
        %v271 = vld [vmem:[%s193 + $0xb0] sm:$0xf]
        %v272 = vld [vmem:[%s193 + $0xb4] sm:$0xff]
        %v273 = vld [vmem:[%s193 + $0xbc] sm:$0xf]
        %v274 = vld [vmem:[%s193 + $0xc0] sm:$0xff]
        %v275 = vld [vmem:[%s193 + $0xc8] sm:$0xf]
        %v276 = vld [vmem:[%s193 + $0xcc] sm:$0xff]
        %v277 = vld [vmem:[%s193 + $0xd4] sm:$0xf]
        %v278 = vld [vmem:[%s193 + $0xd8] sm:$0xff]
        %v279 = vld [vmem:[%s193 + $0xe0] sm:$0xf]
        %v280 = vld [vmem:[%s193 + $0xe4] sm:$0xff]
        %v281 = vld [vmem:[%s193 + $0xec] sm:$0xf]
        %v282 = vld [vmem:[%s193 + $0xf0] sm:$0xff]
        %v283 = vld [vmem:[%s193 + $0xf8] sm:$0xf]
        %v284 = vld [vmem:[%s193 + $0xfc] sm:$0xff]
        %v285 = vld [vmem:[%s193 + $0x104] sm:$0xf]
        %v286 = vld [vmem:[%s193 + $0x108] sm:$0xff]
        %v287 = vld [vmem:[%s193 + $0x110] sm:$0xf]
        %v288 = vld [vmem:[%s193 + $0x114] sm:$0xff]
        %v289 = vld [vmem:[%s193 + $0x11c] sm:$0xf]
        %v290 = vld [vmem:[%s193 + $0x120] sm:$0xff]
        %v291 = vld [vmem:[%s193 + $0x128] sm:$0xf]
        %v292 = vld [vmem:[%s193 + $0x12c] sm:$0xff]
        %v293 = vld [vmem:[%s193 + $0x134] sm:$0xf]
        %v294 = vld [vmem:[%s193 + $0x138] sm:$0xff]
        %v295 = vld [vmem:[%s193 + $0x140] sm:$0xf]
        %v296 = vld [vmem:[%s193 + $0x144] sm:$0xff]
        %v297 = vld [vmem:[%s193 + $0x14c] sm:$0xf]
        %v298 = vld [vmem:[%s193 + $0x150] sm:$0xff]
        %v299 = vld [vmem:[%s193 + $0x158] sm:$0xf]
        %v300 = vld [vmem:[%s193 + $0x15c] sm:$0xff]
        %v301 = vld [vmem:[%s193 + $0x164] sm:$0xf]
        %v302 = vld [vmem:[%s193 + $0x168] sm:$0xff]
        %v303 = vld [vmem:[%s193 + $0x170] sm:$0xf]
        %v304 = vld [vmem:[%s193 + $0x174] sm:$0xff]
        %v305 = vld [vmem:[%s193 + $0x17c] sm:$0xf]
        %v306 = vld [vmem:[%s193 + $0x180] sm:$0xff]
        %v307 = vld [vmem:[%s193 + $0x188] sm:$0xf]
        %v308 = vld [vmem:[%s193 + $0x18c] sm:$0xff]
        %v309 = vld [vmem:[%s193 + $0x194] sm:$0xf]
        %v310 = vld [vmem:[%s193 + $0x198] sm:$0xff]
        %v311 = vld [vmem:[%s193 + $0x1a0] sm:$0xf]
        %v312 = vld [vmem:[%s193 + $0x1a4] sm:$0xff]
        %v313 = vld [vmem:[%s193 + $0x1ac] sm:$0xf]
        %v314 = vld [vmem:[%s193 + $0x1b0] sm:$0xff]
        %v315 = vld [vmem:[%s193 + $0x1b8] sm:$0xf]
        %v316 = vld [vmem:[%s193 + $0x1bc] sm:$0xff]
        %v317 = vld [vmem:[%s193 + $0x1c4] sm:$0xf]
        %v318 = vld [vmem:[%s193 + $0x1c8] sm:$0xff]
        %v319 = vld [vmem:[%s193 + $0x1d0] sm:$0xf]
        %v320 = vld [vmem:[%s193 + $0x1d4] sm:$0xff]
        %v321 = vld [vmem:[%s193 + $0x1dc] sm:$0xf]
        %v322 = vld [vmem:[%s202] sm:$0x7]
        %v324 = vlaneseq
        %v325 = vshrl.u32 %v324, 7
        %v326 = vsub.s32 0, %v325
        %v327 = vrot.slane %v322, %v326
        %v328 = vlaneseq
        %v329 = vshrl.u32 %v328, 7
        %v330 = vsub.s32 1, %v329
        %v331 = vrot.slane %v322, %v330
        %v332 = vlaneseq
        %v333 = vshrl.u32 %v332, 7
        %v334 = vsub.s32 2, %v333
        %v335 = vrot.slane %v322, %v334
        %v419 = vunpack.c.l.b16 %v242
        %v420 = vunpack.c.h.b16 %v242
        %v421 = vunpack.c.l.b16 %v243
        %v422 = vunpack.c.l.b16 %v244
        %v423 = vunpack.c.h.b16 %v244
        %v424 = vunpack.c.l.b16 %v245
        %v425 = vunpack.c.l.b16 %v246
        %v426 = vunpack.c.h.b16 %v246
        %v427 = vunpack.c.l.b16 %v247
        %v428 = vunpack.c.l.b16 %v248
        %v429 = vunpack.c.h.b16 %v248
        %v430 = vunpack.c.l.b16 %v249
        %v431 = vunpack.c.l.b16 %v250
        %v432 = vunpack.c.h.b16 %v250
        %v433 = vunpack.c.l.b16 %v251
        %v434 = vunpack.c.l.b16 %v252
        %v435 = vunpack.c.h.b16 %v252
        %v436 = vunpack.c.l.b16 %v253
        %v437 = vunpack.c.l.b16 %v254
        %v438 = vunpack.c.h.b16 %v254
        %v439 = vunpack.c.l.b16 %v255
        %v440 = vunpack.c.l.b16 %v256
        %v441 = vunpack.c.h.b16 %v256
        %v442 = vunpack.c.l.b16 %v257
        %v443 = vunpack.c.l.b16 %v258
        %v444 = vunpack.c.h.b16 %v258
        %v445 = vunpack.c.l.b16 %v259
        %v446 = vunpack.c.l.b16 %v260
        %v447 = vunpack.c.h.b16 %v260
        %v448 = vunpack.c.l.b16 %v261
        %v449 = vunpack.c.l.b16 %v262
        %v450 = vunpack.c.h.b16 %v262
        %v451 = vunpack.c.l.b16 %v263
        %v452 = vunpack.c.l.b16 %v264
        %v453 = vunpack.c.h.b16 %v264
        %v454 = vunpack.c.l.b16 %v265
        %v455 = vunpack.c.l.b16 %v266
        %v456 = vunpack.c.h.b16 %v266
        %v457 = vunpack.c.l.b16 %v267
        %v458 = vunpack.c.l.b16 %v268
        %v459 = vunpack.c.h.b16 %v268
        %v460 = vunpack.c.l.b16 %v269
        %v461 = vunpack.c.l.b16 %v270
        %v462 = vunpack.c.h.b16 %v270
        %v463 = vunpack.c.l.b16 %v271
        %v464 = vunpack.c.l.b16 %v272
        %v465 = vunpack.c.h.b16 %v272
        %v466 = vunpack.c.l.b16 %v273
        %v467 = vunpack.c.l.b16 %v274
        %v468 = vunpack.c.h.b16 %v274
        %v469 = vunpack.c.l.b16 %v275
        %v470 = vunpack.c.l.b16 %v276
        %v471 = vunpack.c.h.b16 %v276
        %v472 = vunpack.c.l.b16 %v277
        %v473 = vunpack.c.l.b16 %v278
        %v474 = vunpack.c.h.b16 %v278
        %v475 = vunpack.c.l.b16 %v279
        %v476 = vunpack.c.l.b16 %v280
        %v477 = vunpack.c.h.b16 %v280
        %v478 = vunpack.c.l.b16 %v281
        %v479 = vunpack.c.l.b16 %v282
        %v480 = vunpack.c.h.b16 %v282
        %v481 = vunpack.c.l.b16 %v283
        %v482 = vunpack.c.l.b16 %v284
        %v483 = vunpack.c.h.b16 %v284
        %v484 = vunpack.c.l.b16 %v285
        %v485 = vunpack.c.l.b16 %v286
        %v486 = vunpack.c.h.b16 %v286
        %v487 = vunpack.c.l.b16 %v287
        %v488 = vunpack.c.l.b16 %v288
        %v489 = vunpack.c.h.b16 %v288
        %v490 = vunpack.c.l.b16 %v289
        %v491 = vunpack.c.l.b16 %v290
        %v492 = vunpack.c.h.b16 %v290
        %v493 = vunpack.c.l.b16 %v291
        %v494 = vunpack.c.l.b16 %v292
        %v495 = vunpack.c.h.b16 %v292
        %v496 = vunpack.c.l.b16 %v293
        %v497 = vunpack.c.l.b16 %v294
        %v498 = vunpack.c.h.b16 %v294
        %v499 = vunpack.c.l.b16 %v295
        %v500 = vunpack.c.l.b16 %v296
        %v501 = vunpack.c.h.b16 %v296
        %v502 = vunpack.c.l.b16 %v297
        %v503 = vunpack.c.l.b16 %v298
        %v504 = vunpack.c.h.b16 %v298
        %v505 = vunpack.c.l.b16 %v299
        %v506 = vunpack.c.l.b16 %v300
        %v507 = vunpack.c.h.b16 %v300
        %v508 = vunpack.c.l.b16 %v301
        %v509 = vunpack.c.l.b16 %v302
        %v510 = vunpack.c.h.b16 %v302
        %v511 = vunpack.c.l.b16 %v303
        %v512 = vunpack.c.l.b16 %v304
        %v513 = vunpack.c.h.b16 %v304
        %v514 = vunpack.c.l.b16 %v305
        %v515 = vunpack.c.l.b16 %v306
        %v516 = vunpack.c.h.b16 %v306
        %v517 = vunpack.c.l.b16 %v307
        %v518 = vunpack.c.l.b16 %v308
        %v519 = vunpack.c.h.b16 %v308
        %v520 = vunpack.c.l.b16 %v309
        %v521 = vunpack.c.l.b16 %v310
        %v522 = vunpack.c.h.b16 %v310
        %v523 = vunpack.c.l.b16 %v311
        %v524 = vunpack.c.l.b16 %v312
        %v525 = vunpack.c.h.b16 %v312
        %v526 = vunpack.c.l.b16 %v313
        %v527 = vunpack.c.l.b16 %v314
        %v528 = vunpack.c.h.b16 %v314
        %v529 = vunpack.c.l.b16 %v315
        %v530 = vunpack.c.l.b16 %v316
        %v531 = vunpack.c.h.b16 %v316
        %v532 = vunpack.c.l.b16 %v317
        %v533 = vunpack.c.l.b16 %v318
        %v534 = vunpack.c.h.b16 %v318
        %v535 = vunpack.c.l.b16 %v319
        %v536 = vunpack.c.l.b16 %v320
        %v537 = vunpack.c.h.b16 %v320
        %v538 = vunpack.c.l.b16 %v321
        %v539 = vpack.c.b16 %v422, %v419
        %v540 = vpack.c.b16 %v423, %v420
        %v541 = vpack.c.b16 %v424, %v421
        %v542 = vpack.c.b16 %v428, %v425
        %v543 = vpack.c.b16 %v429, %v426
        %v544 = vpack.c.b16 %v430, %v427
        %v545 = vpack.c.b16 %v434, %v431
        %v546 = vpack.c.b16 %v435, %v432
        %v547 = vpack.c.b16 %v436, %v433
        %v548 = vpack.c.b16 %v440, %v437
        %v549 = vpack.c.b16 %v441, %v438
        %v550 = vpack.c.b16 %v442, %v439
        %v551 = vpack.c.b16 %v446, %v443
        %v552 = vpack.c.b16 %v447, %v444
        %v553 = vpack.c.b16 %v448, %v445
        %v554 = vpack.c.b16 %v452, %v449
        %v555 = vpack.c.b16 %v453, %v450
        %v556 = vpack.c.b16 %v454, %v451
        %v557 = vpack.c.b16 %v458, %v455
        %v558 = vpack.c.b16 %v459, %v456
        %v559 = vpack.c.b16 %v460, %v457
        %v560 = vpack.c.b16 %v464, %v461
        %v561 = vpack.c.b16 %v465, %v462
        %v562 = vpack.c.b16 %v466, %v463
        %v563 = vpack.c.b16 %v470, %v467
        %v564 = vpack.c.b16 %v471, %v468
        %v565 = vpack.c.b16 %v472, %v469
        %v566 = vpack.c.b16 %v476, %v473
        %v567 = vpack.c.b16 %v477, %v474
        %v568 = vpack.c.b16 %v478, %v475
        %v569 = vpack.c.b16 %v482, %v479
        %v570 = vpack.c.b16 %v483, %v480
        %v571 = vpack.c.b16 %v484, %v481
        %v572 = vpack.c.b16 %v488, %v485
        %v573 = vpack.c.b16 %v489, %v486
        %v574 = vpack.c.b16 %v490, %v487
        %v575 = vpack.c.b16 %v494, %v491
        %v576 = vpack.c.b16 %v495, %v492
        %v577 = vpack.c.b16 %v496, %v493
        %v578 = vpack.c.b16 %v500, %v497
        %v579 = vpack.c.b16 %v501, %v498
        %v580 = vpack.c.b16 %v502, %v499
        %v581 = vpack.c.b16 %v506, %v503
        %v582 = vpack.c.b16 %v507, %v504
        %v583 = vpack.c.b16 %v508, %v505
        %v584 = vpack.c.b16 %v512, %v509
        %v585 = vpack.c.b16 %v513, %v510
        %v586 = vpack.c.b16 %v514, %v511
        %v587 = vpack.c.b16 %v518, %v515
        %v588 = vpack.c.b16 %v519, %v516
        %v589 = vpack.c.b16 %v520, %v517
        %v590 = vpack.c.b16 %v524, %v521
        %v591 = vpack.c.b16 %v525, %v522
        %v592 = vpack.c.b16 %v526, %v523
        %v593 = vpack.c.b16 %v530, %v527
        %v594 = vpack.c.b16 %v531, %v528
        %v595 = vpack.c.b16 %v532, %v529
        %v596 = vpack.c.b16 %v536, %v533
        %v597 = vpack.c.b16 %v537, %v534
        %v598 = vpack.c.b16 %v538, %v535
        %vm659 = vcmask 523264
        %v661 = vsel %vm659, %v241, 0
        %663 = vmatprep.subr.bf16.mxu0 %v540
        %664 = vmatpush1.bf16.msra.mxu0 %v539
        %665 = vmatprep.subr.bf16.mxu0 %v543
        %666 = vmatpush1.bf16.msra.mxu0 %v542
        %667 = vmatprep.subr.bf16.mxu0 %v546
        %668 = vmatpush1.bf16.msra.mxu0 %v545
        %669 = vmatprep.subr.bf16.mxu0 %v549
        %670 = vmatpush1.bf16.msra.mxu0 %v548
        %671 = vmatprep.subr.bf16.mxu0 %v552
        %672 = vmatpush1.bf16.msra.mxu0 %v551
        %673 = vmatprep.subr.bf16.mxu0 %v555
        %674 = vmatpush1.bf16.msra.mxu0 %v554
        %675 = vmatprep.subr.bf16.mxu0 %v558
        %676 = vmatpush1.bf16.msra.mxu0 %v557
        %677 = vmatprep.subr.bf16.mxu0 %v561
        %678 = vmatpush1.bf16.msra.mxu0 %v560
        %679 = vmatprep.subr.bf16.mxu0 %v564
        %680 = vmatpush1.bf16.msra.mxu0 %v563
        %681 = vmatprep.subr.bf16.mxu0 %v567
        %682 = vmatpush1.bf16.msra.mxu0 %v566
        %683 = vmatprep.subr.bf16.mxu0 %v570
        %684 = vmatpush1.bf16.msra.mxu0 %v569
        %685 = vmatprep.subr.bf16.mxu0 %v573
        %686 = vmatpush1.bf16.msra.mxu0 %v572
        %687 = vmatprep.subr.bf16.mxu0 %v576
        %688 = vmatpush1.bf16.msra.mxu0 %v575
        %689 = vmatprep.subr.bf16.mxu0 %v579
        %690 = vmatpush1.bf16.msra.mxu0 %v578
        %691 = vmatprep.subr.bf16.mxu0 %v582
        %692 = vmatpush1.bf16.msra.mxu0 %v581
        %693 = vmatprep.subr.bf16.mxu0 %v585
        %694 = vmatpush1.bf16.msra.mxu0 %v584
        %695 = vmatprep.mubr.bf16.mxu0 %v240
        %696 = vmatmul.mubr.bf16.gmra.mrb[0].mxu0 %v239
        %v697 = vpop.f32.mrb[0].mxu0
        %v698 = vadd.f32 %v327, %v697
        %v699 = vpop.f32.mrb[0].mxu0
        %v700 = vadd.f32 %v331, %v699
        %v701 = vpop.f32.mrb[0].mxu0
        %v702 = vpop.f32.mrb[0].mxu0
        %703 = vdwg.mxu0
        %704 = vmatprep.subr.bf16.mxu0 %v588
        %705 = vmatpush1.bf16.msra.mxu0 %v587
        %706 = vmatprep.subr.bf16.mxu0 %v591
        %707 = vmatpush1.bf16.msra.mxu0 %v590
        %708 = vmatprep.subr.bf16.mxu0 %v594
        %709 = vmatpush1.bf16.msra.mxu0 %v593
        %710 = vmatprep.subr.bf16.mxu0 %v597
        %711 = vmatpush1.bf16.msra.mxu0 %v596
        %712 = vmatprep.subr.bf16.mxu0 0
        %713 = vmatpush1.bf16.msra.mxu0 0
        %714 = vmatprep.subr.bf16.mxu0 0
        %715 = vmatpush1.bf16.msra.mxu0 0
        %716 = vmatprep.subr.bf16.mxu0 0
        %717 = vmatpush1.bf16.msra.mxu0 0
        %718 = vmatprep.subr.bf16.mxu0 0
        %719 = vmatpush1.bf16.msra.mxu0 0
        %720 = vmatprep.subr.bf16.mxu0 0
        %721 = vmatpush1.bf16.msra.mxu0 0
        %722 = vmatprep.subr.bf16.mxu0 0
        %723 = vmatpush1.bf16.msra.mxu0 0
        %724 = vmatprep.subr.bf16.mxu0 0
        %725 = vmatpush1.bf16.msra.mxu0 0
        %726 = vmatprep.subr.bf16.mxu0 0
        %727 = vmatpush1.bf16.msra.mxu0 0
        %728 = vmatprep.subr.bf16.mxu0 0
        %729 = vmatpush1.bf16.msra.mxu0 0
        %730 = vmatprep.subr.bf16.mxu0 0
        %731 = vmatpush1.bf16.msra.mxu0 0
        %732 = vmatprep.subr.bf16.mxu0 0
        %733 = vmatpush1.bf16.msra.mxu0 0
        %734 = vmatprep.subr.bf16.mxu0 0
        %735 = vmatpush1.bf16.msra.mxu0 0
        %736 = vmatprep.mubr.bf16.mxu0 0
        %737 = vmatmul.mubr.bf16.gmra.mrb[0].mxu0 %v661
        %v738 = vpop.f32.mrb[0].mxu0
        %v739 = vadd.f32 %v698, %v738
        %v740 = vpop.f32.mrb[0].mxu0
        %v741 = vadd.f32 %v700, %v740
        %v742 = vpop.f32.mrb[0].mxu0
        %v743 = vpop.f32.mrb[0].mxu0
        %744 = vdwg.mxu0
        %745 = vmatprep.subr.bf16.mxu0 0
        %746 = vmatpush1.bf16.msra.mxu0 %v541
        %747 = vmatprep.subr.bf16.mxu0 0
        %748 = vmatpush1.bf16.msra.mxu0 %v544
        %749 = vmatprep.subr.bf16.mxu0 0
        %750 = vmatpush1.bf16.msra.mxu0 %v547
        %751 = vmatprep.subr.bf16.mxu0 0
        %752 = vmatpush1.bf16.msra.mxu0 %v550
        %753 = vmatprep.subr.bf16.mxu0 0
        %754 = vmatpush1.bf16.msra.mxu0 %v553
        %755 = vmatprep.subr.bf16.mxu0 0
        %756 = vmatpush1.bf16.msra.mxu0 %v556
        %757 = vmatprep.subr.bf16.mxu0 0
        %758 = vmatpush1.bf16.msra.mxu0 %v559
        %759 = vmatprep.subr.bf16.mxu0 0
        %760 = vmatpush1.bf16.msra.mxu0 %v562
        %761 = vmatprep.subr.bf16.mxu0 0
        %762 = vmatpush1.bf16.msra.mxu0 %v565
        %763 = vmatprep.subr.bf16.mxu0 0
        %764 = vmatpush1.bf16.msra.mxu0 %v568
        %765 = vmatprep.subr.bf16.mxu0 0
        %766 = vmatpush1.bf16.msra.mxu0 %v571
        %767 = vmatprep.subr.bf16.mxu0 0
        %768 = vmatpush1.bf16.msra.mxu0 %v574
        %769 = vmatprep.subr.bf16.mxu0 0
        %770 = vmatpush1.bf16.msra.mxu0 %v577
        %771 = vmatprep.subr.bf16.mxu0 0
        %772 = vmatpush1.bf16.msra.mxu0 %v580
        %773 = vmatprep.subr.bf16.mxu0 0
        %774 = vmatpush1.bf16.msra.mxu0 %v583
        %775 = vmatprep.subr.bf16.mxu0 0
        %776 = vmatpush1.bf16.msra.mxu0 %v586
        %777 = vmatprep.mubr.bf16.mxu0 %v240
        %778 = vmatmul.mubr.bf16.gmra.mrb[0].mxu0 %v239
        %v779 = vpop.f32.mrb[0].mxu0
        %v780 = vadd.f32 %v335, %v779
        %v781 = vpop.f32.mrb[0].mxu0
        %v782 = vpop.f32.mrb[0].mxu0
        %v783 = vpop.f32.mrb[0].mxu0
        %784 = vdwg.mxu0
        %785 = vmatprep.subr.bf16.mxu0 0
        %786 = vmatpush1.bf16.msra.mxu0 %v589
        %787 = vmatprep.subr.bf16.mxu0 0
        %788 = vmatpush1.bf16.msra.mxu0 %v592
        %789 = vmatprep.subr.bf16.mxu0 0
        %790 = vmatpush1.bf16.msra.mxu0 %v595
        %791 = vmatprep.subr.bf16.mxu0 0
        %792 = vmatpush1.bf16.msra.mxu0 %v598
        %793 = vmatprep.subr.bf16.mxu0 0
        %794 = vmatpush1.bf16.msra.mxu0 0
        %795 = vmatprep.subr.bf16.mxu0 0
        %796 = vmatpush1.bf16.msra.mxu0 0
        %797 = vmatprep.subr.bf16.mxu0 0
        %798 = vmatpush1.bf16.msra.mxu0 0
        %799 = vmatprep.subr.bf16.mxu0 0
        %800 = vmatpush1.bf16.msra.mxu0 0
        %801 = vmatprep.subr.bf16.mxu0 0
        %802 = vmatpush1.bf16.msra.mxu0 0
        %803 = vmatprep.subr.bf16.mxu0 0
        %804 = vmatpush1.bf16.msra.mxu0 0
        %805 = vmatprep.subr.bf16.mxu0 0
        %806 = vmatpush1.bf16.msra.mxu0 0
        %807 = vmatprep.subr.bf16.mxu0 0
        %808 = vmatpush1.bf16.msra.mxu0 0
        %809 = vmatprep.subr.bf16.mxu0 0
        %810 = vmatpush1.bf16.msra.mxu0 0
        %811 = vmatprep.subr.bf16.mxu0 0
        %812 = vmatpush1.bf16.msra.mxu0 0
        %813 = vmatprep.subr.bf16.mxu0 0
        %814 = vmatpush1.bf16.msra.mxu0 0
        %815 = vmatprep.subr.bf16.mxu0 0
        %816 = vmatpush1.bf16.msra.mxu0 0
        %817 = vmatprep.mubr.bf16.mxu0 0
        %818 = vmatmul.mubr.bf16.gmra.mrb[0].mxu0 %v661
        %v819 = vpop.f32.mrb[0].mxu0
        %v820 = vadd.f32 %v780, %v819
        %v821 = vpop.f32.mrb[0].mxu0
        %v822 = vpop.f32.mrb[0].mxu0
        %v823 = vpop.f32.mrb[0].mxu0
        %824 = vdwg.mxu0
        %p825 = scmp.eq.s32.totalorder %s19, 1
        %p826 = scmp.eq.s32.totalorder %s19, 2
        %p827 = por %p825, %p826
        %p828 = scmp.eq.s32.totalorder %s19, 4
        %p829 = por %p827, %p828
        %p830 = scmp.eq.s32.totalorder %s19, 6
        %p831 = por %p829, %p830
        %v832 = vmax.f32 %v739, 0.0
        %v833 = vmax.f32 %v741, 0.0
        %v834 = vmax.f32 %v820, 0.0
        %s835 = scalar_select %p831, 1, 0
        %v836 = vstv %s835
        %vm837 = vcmp.eq.s32.totalorder %v836, 1
        %v838 = vsel %vm837, %v832, %v739
        %v839 = vsel %vm837, %v833, %v741
        %v840 = vsel %vm837, %v834, %v820
        %p841 = scmp.eq.s32.totalorder %s19, 3
        %p842 = por %p826, %p841
        %s843 = scalar_select %p842, 0.0, 1.0
        %v844 = vstv %s843
        %v845 = vmul.f32 %v844, %v236
        %v846 = vmul.f32 %v844, %v237
        %v847 = vmul.f32 %v844, %v238
        %v848 = vadd.f32 %v845, %v838
        %v849 = vadd.f32 %v846, %v839
        %v850 = vadd.f32 %v847, %v840
        %851 = vst [vmem:[#allocation2] sm:$0xff] %v848
        %852 = vst [vmem:[#allocation2 + $0x8] sm:$0xff] %v849
        %853 = vst [vmem:[#allocation2 + $0x10] sm:$0xff] %v850
        // Predicated region
        $region49: #{tpu_custom_call.1} parent=31 // pred_check
          %p854 = pneg %p830
        $region50: #{tpu_custom_call.1} parent=31 // pred_check_branch
          %856 = sbr.rel (%p854) target = $region52
        $region51: #{tpu_custom_call.1} parent=31 // pred_region
          %857 = vst [vmem:[#allocation9] sm:$0xff] %v848
          %858 = vst [vmem:[#allocation9 + $0x8] sm:$0xff] %v849
          %859 = vst [vmem:[#allocation9 + $0x10] sm:$0xff] %v850
        $region52: #{tpu_custom_call.1} parent=31 // pred_fallthru
          _
        // Predicated region
        $region53: #{tpu_custom_call.1} parent=31 // pred_check
          %p860 = pneg %p105
        $region54: #{tpu_custom_call.1} parent=31 // pred_check_branch
          %862 = sbr.rel (%p860) target = $region56
        $region55: #{tpu_custom_call.1} parent=31 // pred_region
          %s864 = ssub.s32 384, 384
          %865 = vsyncadd [#allocation5], %s864
          %s867 = sshll.u32 [#allocation9], 4
          %s868 = int_to_ptr.vmem [resolvable:$true] %s867
          %870 = dma.vmem_to_hbm [thread:$0]  %s868, 384, %s3, [#allocation5]
        $region56: #{tpu_custom_call.1} parent=31 // pred_fallthru
          _
        // Predicated region
        $region57: #{tpu_custom_call.1} parent=31 // pred_check
          %p871 = pneg %p105
        $region58: #{tpu_custom_call.1} parent=31 // pred_check_branch
          %873 = sbr.rel (%p871) target = $region60
        $region59: #{tpu_custom_call.1} parent=31 // pred_region
          %874 = dma.done [#allocation5], 384
        $region60: #{tpu_custom_call.1} parent=31 // pred_fallthru
          _
      $region32: #{tpu_custom_call.1} parent=5 // pred_fallthru
        _
      %p875 = scmp.le.s32.totalorder 2, %s14
      // Predicated region
      $region61: #{tpu_custom_call.1} parent=5 // pred_check
        %p876 = pneg %p875
      $region62: #{tpu_custom_call.1} parent=5 // pred_check_branch
        %878 = sbr.rel (%p876) target = $region64
      $region63: #{tpu_custom_call.1} parent=5 // pred_region
        %s879 = ssub.s32 %s14, 2
      $region64: #{tpu_custom_call.1} parent=5 // pred_fallthru
        _
    $region6: #{tpu_custom_call.1} parent=1 // loop_footer
      %s18 = sadd.s32 1, %s14
    $region7: #{tpu_custom_call.1} parent=1 // loop_footer_branch
      %13 = sbr.rel target = $region3
    $region8: #{tpu_custom_call.1} parent=1 // loop_exit
      _
    %880 = vsyncpa [#allocation4], 1
    %s881 = scalar_lea.sflag [#allocation4], 1
    %882 = vsyncpa %s881, 1
    %883 = vsyncpa [#allocation7], 1
    %s884 = scalar_lea.sflag [#allocation7], 1
    %885 = vsyncpa %s884, 1
    %886 = vsyncpa [#allocation5], 1
    %s887 = scalar_lea.sflag [#allocation5], 1
    %888 = vsyncpa %s887, 1

</llo_original>
